<compile_context>
chip_gen: v7x
topology: tpu7x:2x2x1
jax: 0.10.0
libtpu: 0.0.40
codegen_flags: <defaults>
</compile_context>

<pallas_src>
import functools

import jax
import jax.numpy as jnp
from jax import lax
from jax.experimental import pallas as pl
from jax.experimental.pallas import tpu as pltpu

_LANES = 128
_SUBLANES = 8
_NCORES = 2                          # leading grid split for v7x megacore; serial elsewhere
_SUM_BLOCK_BYTES = 4 * 1024 * 1024   # reduction path: ~4 MiB DMA per grid step
_EW_BLOCK_BYTES = 2 * 1024 * 1024    # 'none' path streams in+out -> smaller blocks
_VMEM_LIMIT_BYTES = 40 * 1024 * 1024 # explicit scoped-VMEM cap (safe on v5e/v6e/v7x)
_LEADING_SEM = "parallel"            # see TODO above


# ---------------------------------------------------------------------------
# Helpers
# ---------------------------------------------------------------------------
def _round_up(x, m):
    return ((x + m - 1) // m) * m


def _slab_view(pred):
    """View pred as a lane-dense (rows, width) slab; copy-free when possible."""
    flat = pred.reshape(-1)                      # free (row-major)
    n = flat.shape[0]
    for width in (1024, 512, 256, 128):          # widest lane-dense view that divides n
        if n % (_SUBLANES * width) == 0:
            return flat.reshape(n // width, width), n
    # Irregular element count (rare): minimal zero-pad so the slab is (8,128)-aligned.
    n_pad = _round_up(n, _SUBLANES * _LANES)
    flat = jnp.pad(flat, (0, n_pad - n))
    return flat.reshape(n_pad // _LANES, _LANES), n
    # NOTE: slab rows are always a multiple of 8.


def _block_rows(width, itemsize, target_bytes):
    """Rows per grid step for a byte-targeted, dtype-aware DMA size."""
    return max(32, (target_bytes // (width * itemsize)) // 32 * 32)


# ---------------------------------------------------------------------------
# Kernels
# ---------------------------------------------------------------------------
def _sq_sum_kernel(x_ref, o_ref, acc_ref, *, blocks_per_core, block_rows,
                   rows_valid, acc_rows, need_mask):
    """Sum-of-squares: VMEM (acc_rows, W) scratch accumulator, scalar per-core out."""
    j = pl.program_id(1)

    @pl.when(j == 0)
    def _init():
        acc_ref[...] = jnp.zeros_like(acc_ref)

    x = x_ref[...].astype(jnp.float32)
    if need_mask:  # static: only compiled in when a partial/phantom block exists
        # Per-step scalar limit; the iota is grid-invariant (hoistable).
        block_idx = pl.program_id(0) * blocks_per_core + j
        limit = rows_valid - block_idx * block_rows     # <=0 for phantom blocks
        row = lax.broadcasted_iota(jnp.int32, x.shape, 0)
        x = jnp.where(row < limit, x, jnp.float32(0.0))

    xs = x * x
    # (T, W) -> (T//acc_rows, acc_rows, W) is a layout-free sublane regrouping; the
    # sum over the leading axis is plain vreg-wise VPU adds, acc stays in VMEM.
    acc_ref[...] += xs.reshape(-1, acc_rows, x.shape[-1]).sum(axis=0)

    @pl.when(j == pl.num_programs(1) - 1)
    def _finalize():
        # One XLU cross-lane reduce per core, off the DMA/VALU critical path.
        o_ref[...] = jnp.sum(acc_ref[...], keepdims=True)


def _sq_scale_kernel(w_ref, x_ref, o_ref):
    """Elementwise x**2 * weight (reduction='none'); weight read from SMEM."""
    x = x_ref[...].astype(jnp.float32)
    o_ref[...] = (x * x * w_ref[0]).astype(o_ref.dtype)


# ---------------------------------------------------------------------------
# Wrappers
# ---------------------------------------------------------------------------
def _sum_of_squares(pred):
    slab, _ = _slab_view(pred)
    rows, width = slab.shape
    itemsize = jnp.dtype(slab.dtype).itemsize
    t = _block_rows(width, itemsize, _SUM_BLOCK_BYTES)

    if rows <= t:
        t = rows                                  # single block covers the slab
        nblocks = 1
        g0, g1 = 1, 1
    else:
        nblocks = -(-rows // t)                   # real blocks
        g0 = _NCORES                              # always 2-way split (v7x megacore)
        g1 = _round_up(nblocks, g0) // g0         # may include one phantom block

    acc_rows = 32 if t % 32 == 0 else 8           # wider accumulator -> more ILP
    need_mask = (g0 * g1 * t) > rows
    last_real = nblocks - 1

    def x_map(i, j):
        # Clamp so the phantom trailing block never issues an out-of-bounds DMA;
        # its contribution is zeroed by the in-kernel row mask (limit <= 0).
        return (jnp.minimum(i * g1 + j, last_real), 0)

    kernel = functools.partial(
        _sq_sum_kernel, blocks_per_core=g1, block_rows=t,
        rows_valid=rows, acc_rows=acc_rows, need_mask=need_mask)

    n = rows * width
    cost = pl.CostEstimate(flops=2 * n, transcendentals=0,
                           bytes_accessed=n * itemsize + g0 * 4)

    partials = pl.pallas_call(
        kernel,
        out_shape=jax.ShapeDtypeStruct((g0, 1, 1), jnp.float32),
        grid_spec=pltpu.PrefetchScalarGridSpec(
            num_scalar_prefetch=0,
            grid=(g0, g1),
            in_specs=[pl.BlockSpec((t, width), x_map)],
            # One scalar output block per core; written only at the last j step.
            out_specs=pl.BlockSpec((None, 1, 1), lambda i, j: (i, 0, 0)),
            scratch_shapes=[pltpu.VMEM((acc_rows, width), jnp.float32)],
        ),
        compiler_params=pltpu.CompilerParams(
            dimension_semantics=(_LEADING_SEM, "arbitrary"),
            vmem_limit_bytes=_VMEM_LIMIT_BYTES),
        cost_estimate=cost,
    )(slab)

    # Only g0 (<=2) scalars left; trivial final add.
    return jnp.sum(partials)


def _square_scale(pred, weight):
    slab, n = _slab_view(pred)
    rows, width = slab.shape
    itemsize = jnp.dtype(slab.dtype).itemsize
    t = _block_rows(width, itemsize, _EW_BLOCK_BYTES)
    if rows <= t:
        t = rows
    nblocks = -(-rows // t)                       # partial trailing block is fine:
                                                  # Pallas clamps edge-block DMAs.
    w_arr = jnp.asarray(weight, jnp.float32).reshape((1,))
    cost = pl.CostEstimate(flops=2 * rows * width, transcendentals=0,
                           bytes_accessed=2 * rows * width * itemsize)

    out = pl.pallas_call(
        _sq_scale_kernel,
        out_shape=jax.ShapeDtypeStruct(slab.shape, pred.dtype),
        grid_spec=pltpu.PrefetchScalarGridSpec(
            num_scalar_prefetch=0,
            grid=(nblocks,),
            in_specs=[
                pl.BlockSpec(memory_space=pltpu.MemorySpace.SMEM),   # weight scalar
                pl.BlockSpec((t, width), lambda i: (i, 0)),          # input tile
            ],
            out_specs=pl.BlockSpec((t, width), lambda i: (i, 0)),
        ),
        compiler_params=pltpu.CompilerParams(
            dimension_semantics=(_LEADING_SEM,),
            vmem_limit_bytes=_VMEM_LIMIT_BYTES),
        cost_estimate=cost,
    )(w_arr, slab)

    if out.size == n:                       # common case: pure reshape, no copy
        return out.reshape(pred.shape)
    return out.reshape(-1)[:n].reshape(pred.shape)   # rare irregular-size fallback


def norm_loss(pred, loss_weight=1.0, reduction='mean',
              loss_weight_override=None, reduction_override=None):
    """Pallas implementation of NormLoss.forward."""
    assert reduction_override in (None, 'none', 'mean', 'sum')
    red = reduction_override if reduction_override else reduction
    w = loss_weight_override if loss_weight_override is not None else loss_weight

    if red == 'none':
        return _square_scale(pred, w)

    s = _sum_of_squares(pred)
    if red == 'mean':
        # float32(pred.size) is inexact above 2^24 elements; relative error on the
        # mean is < 1e-7 and matches torch's own float accumulation noise.
        s = s / jnp.float32(pred.size)
    # red == 'sum' keeps s as-is
    s = s * jnp.asarray(w, jnp.float32)
    return s.astype(pred.dtype)             # dtype parity with the PyTorch module


# ---------------------------------------------------------------------------
# Demo / self-check
# ---------------------------------------------------------------------------
if __name__ == "__main__":
    key = jax.random.PRNGKey(0)
    k1, k2, k3 = jax.random.split(key, 3)
    loss_weight = 1.0

    # Small shape (single-block path): mean / sum / none.
    pred = jax.random.normal(k1, (2, 4, 16, 16), dtype=jnp.float32)

    out_mean = jax.block_until_ready(norm_loss(pred, loss_weight, 'mean'))
    ref_mean = jnp.mean(pred ** 2) * loss_weight
    assert jnp.allclose(out_mean, ref_mean, rtol=1e-5, atol=1e-6), (out_mean, ref_mean)

    out_sum = jax.block_until_ready(
        norm_loss(pred, loss_weight, 'mean', reduction_override='sum'))
    ref_sum = jnp.sum(pred ** 2) * loss_weight
    assert jnp.allclose(out_sum, ref_sum, rtol=1e-5, atol=1e-4), (out_sum, ref_sum)

    out_none = jax.block_until_ready(
        norm_loss(pred, loss_weight, 'mean',
                  loss_weight_override=0.5, reduction_override='none'))
    ref_none = (pred ** 2) * 0.5
    assert out_none.shape == pred.shape
    assert jnp.allclose(out_none, ref_none, rtol=1e-5, atol=1e-6)

    # Multi-block path with a partial trailing block (row mask) for both kernels.
    pred_b = jax.random.normal(k2, (5, 1000, 256), dtype=jnp.float32)
    out_b = jax.block_until_ready(norm_loss(pred_b, 2.0, 'sum'))
    ref_b = jnp.sum(pred_b ** 2) * 2.0
    assert jnp.allclose(out_b, ref_b, rtol=1e-4), (out_b, ref_b)

    out_b_none = jax.block_until_ready(norm_loss(pred_b, 1.0, 'none'))
    assert jnp.allclose(out_b_none, pred_b ** 2, rtol=1e-5, atol=1e-5)

    # Odd real-block count -> clamped + fully-masked phantom trailing block
    # (guarantees the 2-way leading-axis split used for v7x).
    pred_c = jax.random.normal(k3, (3, 1024, 1024), dtype=jnp.float32)
    out_c = jax.block_until_ready(norm_loss(pred_c, 1.0, 'mean'))
    ref_c = jnp.mean(pred_c ** 2)
    assert jnp.allclose(out_c, ref_c, rtol=1e-4), (out_c, ref_c)

    # bf16 input exercises the dtype-aware (byte-targeted) block sizing.
    pred_d = jax.random.normal(k1, (4, 512, 512), dtype=jnp.bfloat16)
    out_d = jax.block_until_ready(norm_loss(pred_d, 1.0, 'sum'))
    ref_d = jnp.sum(pred_d.astype(jnp.float32) ** 2)
    assert jnp.allclose(out_d.astype(jnp.float32), ref_d, rtol=2e-2), (out_d, ref_d)

    print("KERNEL_OK")
</pallas_src>

<mosaic_0001>
module attributes {stable_mosaic.version = 11 : i64} {
  func.func @_sq_sum_kernel(%arg0: i32, %arg1: i32, %arg2: memref<8x256xf32, #tpu.memory_space<vmem>>, %arg3: memref<1x1x1xf32, #tpu.memory_space<vmem>>, %arg4: memref<8x256xf32, #tpu.memory_space<vmem>>) attributes {dimension_semantics = [#tpu.dimension_semantics<parallel>, #tpu.dimension_semantics<arbitrary>], iteration_bounds = array<i64: 1, 1>, scalar_prefetch = 0 : i64, scratch_operands = 1 : i64, tpu.core_type = #tpu.core_type<tc>, window_params = [{transform_indices = @transform_0, window_bounds = array<i64: 8, 256>}, {transform_indices = @transform_1, window_bounds = array<i64: 1, 1, 1>}]} {
    %c0_i32 = arith.constant 0 : i32
    %0 = arith.cmpi eq, %arg1, %c0_i32 : i32
    %1 = arith.extui %0 : i1 to i32
    %c0_i32_0 = arith.constant 0 : i32
    %2 = arith.cmpi ne, %1, %c0_i32_0 : i32
    scf.if %2 {
      %cst_8 = arith.constant 0.000000e+00 : f32
      %13 = vector.broadcast %cst_8 : f32 to vector<8x256xf32>
      %c0_9 = arith.constant 0 : index
      %c0_10 = arith.constant 0 : index
      %14 = vector.load %arg4[%c0_9, %c0_10] : memref<8x256xf32, #tpu.memory_space<vmem>>, vector<8x256xf32>
      tpu.vector_store %arg4[%c0_9, %c0_10], %13 {strides = array<i32>} : memref<8x256xf32, #tpu.memory_space<vmem>>, vector<8x256xf32>,
    } else {
    }
    %c0 = arith.constant 0 : index
    %c0_1 = arith.constant 0 : index
    %3 = vector.load %arg2[%c0, %c0_1] : memref<8x256xf32, #tpu.memory_space<vmem>>, vector<8x256xf32>
    %4 = arith.mulf %3, %3 : vector<8x256xf32>
    %c0_2 = arith.constant 0 : index
    %c0_3 = arith.constant 0 : index
    %5 = vector.load %arg4[%c0_2, %c0_3] : memref<8x256xf32, #tpu.memory_space<vmem>>, vector<8x256xf32>
    %6 = vector.shape_cast %4 : vector<8x256xf32> to vector<1x8x256xf32>
    %cst = arith.constant dense<0.000000e+00> : vector<8x256xf32>
    %7 = vector.multi_reduction <add>, %6, %cst [0] : vector<1x8x256xf32> to vector<8x256xf32>
    %8 = arith.addf %5, %7 : vector<8x256xf32>
    %c0_4 = arith.constant 0 : index
    %c0_5 = arith.constant 0 : index
    %9 = vector.load %arg4[%c0_4, %c0_5] : memref<8x256xf32, #tpu.memory_space<vmem>>, vector<8x256xf32>
    tpu.vector_store %arg4[%c0_4, %c0_5], %8 {strides = array<i32>} : memref<8x256xf32, #tpu.memory_space<vmem>>, vector<8x256xf32>,
    %c0_i32_6 = arith.constant 0 : i32
    %10 = arith.cmpi eq, %arg1, %c0_i32_6 : i32
    %11 = arith.extui %10 : i1 to i32
    %c0_i32_7 = arith.constant 0 : i32
    %12 = arith.cmpi ne, %11, %c0_i32_7 : i32
    scf.if %12 {
      %c0_8 = arith.constant 0 : index
      %c0_9 = arith.constant 0 : index
      %13 = vector.load %arg4[%c0_8, %c0_9] : memref<8x256xf32, #tpu.memory_space<vmem>>, vector<8x256xf32>
      %14 = vector.shape_cast %13 : vector<8x256xf32> to vector<1x8x256xf32>
      %cst_10 = arith.constant dense<0.000000e+00> : vector<1xf32>
      %15 = vector.multi_reduction <add>, %14, %cst_10 [1, 2] : vector<1x8x256xf32> to vector<1xf32>
      %16 = vector.shape_cast %15 : vector<1xf32> to vector<1x1x1xf32>
      %17 = vector.extract %16[0, 0, 0] : f32 from vector<1x1x1xf32>
      %18 = vector.broadcast %17 : f32 to vector<1x1xf32>
      %c0_11 = arith.constant 0 : index
      %c0_12 = arith.constant 0 : index
      %c0_13 = arith.constant 0 : index
      %19 = vector.load %arg3[%c0_11, %c0_12, %c0_13] : memref<1x1x1xf32, #tpu.memory_space<vmem>>, vector<1x1x1xf32>
      %20 = vector.shape_cast %19 : vector<1x1x1xf32> to vector<1x1xf32>
      %21 = vector.shape_cast %18 : vector<1x1xf32> to vector<1x1x1xf32>
      tpu.vector_store %arg3[%c0_11, %c0_12, %c0_13], %21 {strides = array<i32>} : memref<1x1x1xf32, #tpu.memory_space<vmem>>, vector<1x1x1xf32>,
    } else {
    }
    return
  }
  func.func @transform_0(%arg0: i32, %arg1: i32) -> (i32, i32) {
    %c1_i32 = arith.constant 1 : i32
    %0 = arith.muli %arg0, %c1_i32 : i32
    %1 = arith.addi %0, %arg1 : i32
    %c0_i32 = arith.constant 0 : i32
    %2 = arith.minsi %1, %c0_i32 : i32
    %c0_i32_0 = arith.constant 0 : i32
    %c0_i32_1 = arith.constant 0 : i32
    return %2, %c0_i32_0 : i32, i32
  }
  func.func @transform_1(%arg0: i32, %arg1: i32) -> (i32, i32, i32) {
    %c0_i32 = arith.constant 0 : i32
    %c0_i32_0 = arith.constant 0 : i32
    %c0_i32_1 = arith.constant 0 : i32
    return %arg0, %c0_i32, %c0_i32_0 : i32, i32, i32
  }
}

</mosaic_0001>

<llo_original>
// kernel: tpu_custom_call.1
$region0: #{tpu_custom_call.1}
  #allocation0 [shape = 'u32[]', space=smem, size = 0x4, offset = 0x4, fixed_abs, tag = 'smem constant byte address 0x4 - core index']
  #allocation1 [shape = 'u32[144,128]{1,0:T(1,128)}', space=vmem, size = 0x12000, scoped, tag = 'internal scratch']
  #allocation2 [shape = 'f32[8,256]{1,0:T(8,128)}', space=vmem, size = 0x2000, scoped, tag = 'scratch operand']
  %s0 = inlined_call_operand.hbm [shape: f32[8,256], index: 0, kind: input, shape index: {}]
  %s1 = inlined_call_operand.hbm [shape: f32[1,1,1], index: 1, kind: output, shape index: {}]
  %s2 = sld [smem:[#allocation0]]
  $region26: #{tpu_custom_call.1} parent=0
    _
  %s4 = ssub.s32 1, %s2
  %s5 = scalar_select 0, %s4, %s2
  $region1: #{tpu_custom_call.1} parent=0
    #allocation3 [shape = 'u8[8192]{0}', space=vmem, size = 0x2000, scoped, tag = 'input window, operand 0, single buffered']
    #allocation4 [shape = 's32[1]{0}', space=sflag, size = 0x4, scoped, tag = 'scoped memory for tpu_custom_call.1']
    #allocation5 [shape = 's32[1]{0}', space=sflag, size = 0x4, scoped, tag = 'scoped memory for tpu_custom_call.1']
    #allocation6 [shape = 'u8[512]{0}', space=vmem, size = 0x400, scoped, tag = 'output window, operand 0, single buffered']
    %6 = vsyncpa [#allocation4], 0
    %7 = vsyncpa [#allocation5], 0
    // Predicated region
    $region2: #{tpu_custom_call.1} parent=1 // pred_check
      _
    $region3: #{tpu_custom_call.1} parent=1 // pred_check_branch
      %9 = sbr.rel (0) target = $region5
    $region4: #{tpu_custom_call.1} parent=1 // pred_region
      %s10 = sadd.s32 0, 0
      %p11 = scmp.lt.s32.totalorder %s10, 0
      %s12 = scalar_select %p11, %s10, 0
      %s14 = ssub.s32 256, 256
      %15 = vsyncadd [#allocation4], %s14
      %s16 = smul.addr %s12, 2
      %s17 = smul.addr %s16, 128
      %s18 = scalar_lea.hbm %s0, %s17
      %s20 = sshll.u32 [#allocation3], 4
      %s21 = int_to_ptr.vmem [resolvable:$true] %s20
      %23 = dma.hbm_to_vmem [thread:$0]  %s18, 256, %s21, [#allocation4]
    $region5: #{tpu_custom_call.1} parent=1 // pred_fallthru
      _
    // Predicated region
    $region6: #{tpu_custom_call.1} parent=1 // pred_check
      _
    $region7: #{tpu_custom_call.1} parent=1 // pred_check_branch
      %25 = sbr.rel (0) target = $region9
    $region8: #{tpu_custom_call.1} parent=1 // pred_region
      %26 = dma.done [#allocation4], 256
    $region9: #{tpu_custom_call.1} parent=1 // pred_fallthru
      _
    %s27 = sadd.s32 0, 0
    %p28 = scmp.lt.s32.totalorder %s27, 0
    %s29 = scalar_select %p28, %s27, 0
    %p30 = scmp.eq.s32.totalorder 0, 0
    // Predicated region
    $region10: #{tpu_custom_call.1} parent=1 // pred_check
      %p31 = pneg %p30
    $region11: #{tpu_custom_call.1} parent=1 // pred_check_branch
      %33 = sbr.rel (%p31) target = $region13
    $region12: #{tpu_custom_call.1} parent=1 // pred_region
      %34 = vst [vmem:[#allocation2] sm:$0xff] 0.0
      %35 = vst [vmem:[#allocation2 + $0x8] sm:$0xff] 0.0
    $region13: #{tpu_custom_call.1} parent=1 // pred_fallthru
      _
    %v36 = vld [vmem:[#allocation3] sm:$0xff]
    %v37 = vld [vmem:[#allocation3 + $0x8] sm:$0xff]
    %v38 = vmul.f32 %v36, %v36
    %v39 = vmul.f32 %v37, %v37
    %v40 = vld [vmem:[#allocation2] sm:$0xff]
    %v41 = vld [vmem:[#allocation2 + $0x8] sm:$0xff]
    %v42 = vadd.f32 %v38, 0.0
    %v43 = vadd.f32 %v39, 0.0
    %v44 = vadd.f32 %v40, %v42
    %v45 = vadd.f32 %v41, %v43
    %46 = vst [vmem:[#allocation2] sm:$0xff] %v44
    %47 = vst [vmem:[#allocation2 + $0x8] sm:$0xff] %v45
    // Predicated region
    $region14: #{tpu_custom_call.1} parent=1 // pred_check
      %p48 = pneg %p30
    $region15: #{tpu_custom_call.1} parent=1 // pred_check_branch
      %50 = sbr.rel (%p48) target = $region17
    $region16: #{tpu_custom_call.1} parent=1 // pred_region
      %v51 = vld [vmem:[#allocation2] sm:$0xff]
      %v52 = vld [vmem:[#allocation2 + $0x8] sm:$0xff]
      %v53 = vadd.f32 %v51, %v52
      %54 = vadd.xlane.f32.xlu0 %v53
      %v55 = vpop.xlane.xlu0 %54
      %v56 = vrot.slane %v55, 4
      %v57 = vadd.f32 %v55, %v56
      %v58 = vrot.slane %v57, 2
      %v59 = vadd.f32 %v57, %v58
      %v60 = vrot.slane %v59, 1
      %v61 = vadd.f32 %v59, %v60
      %s62 = vtos %v61
      %v63 = vstv %s62
      %vm64 = vcmask 0
      %65 = vst.msk [vmem:[#allocation6] sm:$0x1] %vm64, %v63
    $region17: #{tpu_custom_call.1} parent=1 // pred_fallthru
      _
    // Predicated region
    $region18: #{tpu_custom_call.1} parent=1 // pred_check
      _
    $region19: #{tpu_custom_call.1} parent=1 // pred_check_branch
      %67 = sbr.rel (0) target = $region21
    $region20: #{tpu_custom_call.1} parent=1 // pred_region
      %s69 = ssub.s32 16, 16
      %70 = vsyncadd [#allocation5], %s69
      %s72 = sshll.u32 [#allocation6], 4
      %s73 = int_to_ptr.vmem [resolvable:$true] %s72
      %75 = dma.vmem_to_hbm [thread:$0]  %s73, 16, %s1, [#allocation5]
    $region21: #{tpu_custom_call.1} parent=1 // pred_fallthru
      _
    // Predicated region
    $region22: #{tpu_custom_call.1} parent=1 // pred_check
      _
    $region23: #{tpu_custom_call.1} parent=1 // pred_check_branch
      %77 = sbr.rel (0) target = $region25
    $region24: #{tpu_custom_call.1} parent=1 // pred_region
      %78 = dma.done [#allocation5], 16
    $region25: #{tpu_custom_call.1} parent=1 // pred_fallthru
      _
    %79 = vsyncpa [#allocation4], 1
    %80 = vsyncpa [#allocation5], 1

</llo_original>
